<compile_context>
chip_gen: v5e
topology: v5e:2x2
jax: 0.10.0
libtpu: 0.0.40
codegen_flags: <defaults>
</compile_context>

<pallas_src>
import functools

import jax
import jax.numpy as jnp
from jax.experimental import pallas as pl
from jax.experimental.pallas import tpu as pltpu

D_IN = 784


def _round_up(x, m):
    return (x + m - 1) // m * m


def _autoencoder_kernel(x_ref,
                        w1_ref, b1_ref,
                        w2_ref, b2_ref,
                        w3_ref, b3_ref,
                        w4_ref, b4_ref,
                        o_ref):
    """Fused encoder+decoder MLP: 4 bf16 matmuls (f32 acc) + bias + ReLU."""
    x = x_ref[...]
    if x.dtype != jnp.bfloat16:            # static at trace time
        x = x.astype(jnp.bfloat16)

    def layer(h, w_ref, b_ref):
        y = jnp.dot(h, w_ref[...], preferred_element_type=jnp.float32) + b_ref[...]
        return jnp.maximum(y, 0.0).astype(jnp.bfloat16)

    h = layer(x, w1_ref, b1_ref)           # (bb, 128)
    h = layer(h, w2_ref, b2_ref)           # (bb, 32)
    h = layer(h, w3_ref, b3_ref)           # (bb, 128)

    y = jnp.dot(h, w4_ref[...], preferred_element_type=jnp.float32) + b4_ref[...]
    o_ref[...] = jnp.maximum(y, 0.0).astype(o_ref.dtype)   # (bb, 784)


@functools.partial(jax.jit, static_argnames=("block_b", "out_dtype"))
def autoencoder_forward(x, params, *, block_b=1024, out_dtype=jnp.float32):
    """x: (B, 784). params: dict with w1..w4 (in,out layout) and b1..b4 (1,out).

    Returns (B, 784) in `out_dtype` (f32 default; pass bf16 to halve the
    output HBM write if downstream tolerates it).
    """
    B, D = x.shape
    assert D == D_IN

    # Batch tile: multiple of 16 (bf16 sublane packing), never larger than the
    # batch, and chosen so mid-size batches give >= 2 grid steps (so the
    # "parallel" axis can shard across both v7x TensorCores).
    if B <= 16:
        bb = B                                     # single block == full batch dim
    else:
        bb = min(block_b, max(16, _round_up(pl.cdiv(B, 2), 16)))
        bb = min(bb, (B // 16) * 16)
    grid = (pl.cdiv(B, bb),)                       # ragged last block is fine:
                                                   # rows are independent, OOB
                                                   # rows dropped on store.

    # Weights bf16, biases f32 (no-ops if already prepared via prepare_params).
    w1 = params["w1"].astype(jnp.bfloat16)
    b1 = params["b1"].astype(jnp.float32)
    w2 = params["w2"].astype(jnp.bfloat16)
    b2 = params["b2"].astype(jnp.float32)
    w3 = params["w3"].astype(jnp.bfloat16)
    b3 = params["b3"].astype(jnp.float32)
    w4 = params["w4"].astype(jnp.bfloat16)
    b4 = params["b4"].astype(jnp.float32)

    def resident(arr):
        # whole array, same block every grid step -> stays resident in VMEM
        return pl.BlockSpec(arr.shape, lambda i: (0, 0))

    flops = 2 * B * (D_IN * 128 + 128 * 32 + 32 * 128 + 128 * D_IN)
    weight_bytes = sum(int(a.size) * a.dtype.itemsize
                       for a in (w1, b1, w2, b2, w3, b3, w4, b4))
    bytes_accessed = (B * D_IN * x.dtype.itemsize
                      + B * D_IN * jnp.dtype(out_dtype).itemsize
                      + weight_bytes)

    out = pl.pallas_call(
        _autoencoder_kernel,
        out_shape=jax.ShapeDtypeStruct((B, D_IN), out_dtype),
        grid_spec=pltpu.PrefetchScalarGridSpec(
            num_scalar_prefetch=0,
            grid=grid,
            in_specs=[
                pl.BlockSpec((bb, D_IN), lambda i: (i, 0)),   # x tile
                resident(w1), resident(b1),
                resident(w2), resident(b2),
                resident(w3), resident(b3),
                resident(w4), resident(b4),
            ],
            out_specs=pl.BlockSpec((bb, D_IN), lambda i: (i, 0)),
        ),
        compiler_params=pltpu.CompilerParams(
            dimension_semantics=("parallel",),
            vmem_limit_bytes=48 * 1024 * 1024,
        ),
        cost_estimate=pl.CostEstimate(
            flops=flops, transcendentals=0, bytes_accessed=bytes_accessed),
    )(x, w1, b1, w2, b2, w3, b3, w4, b4)

    return out


def init_params(key):
    """nn.Linear-style init; weights stored transposed as (in, out)."""
    dims = [(D_IN, 128), (128, 32), (32, 128), (128, D_IN)]
    params = {}
    for idx, (fan_in, fan_out) in enumerate(dims, start=1):
        key, kw, kb = jax.random.split(key, 3)
        bound = 1.0 / jnp.sqrt(fan_in)
        params[f"w{idx}"] = jax.random.uniform(
            kw, (fan_in, fan_out), jnp.float32, -bound, bound)
        params[f"b{idx}"] = jax.random.uniform(
            kb, (1, fan_out), jnp.float32, -bound, bound)
    return params


def prepare_params(params):
    """One-time prep (outside jit): weights -> bf16, biases -> (1, out) f32."""
    prepped = {}
    for i in range(1, 5):
        prepped[f"w{i}"] = params[f"w{i}"].astype(jnp.bfloat16)
        prepped[f"b{i}"] = params[f"b{i}"].astype(jnp.float32).reshape(1, -1)
    return prepped


def reference_forward(x, params):
    """Pure-JAX reference using the same bf16-operand / f32-accumulate recipe."""
    def layer(h, w, b):
        y = jnp.dot(h.astype(jnp.bfloat16), w.astype(jnp.bfloat16),
                    preferred_element_type=jnp.float32) + b.astype(jnp.float32)
        return jnp.maximum(y, 0.0)

    h = layer(x, params["w1"], params["b1"])
    h = layer(h, params["w2"], params["b2"])
    h = layer(h, params["w3"], params["b3"])
    h = layer(h, params["w4"], params["b4"])
    return h


if __name__ == "__main__":
    key = jax.random.PRNGKey(0)
    kp, kx1, kx2 = jax.random.split(key, 3)

    params = prepare_params(init_params(kp))

    # Small batch: single block equal to the full batch dim.
    x1 = jax.random.uniform(kx1, (8, D_IN), jnp.float32)
    out1 = jax.block_until_ready(autoencoder_forward(x1, params))
    ref1 = reference_forward(x1, params)
    assert out1.shape == (8, D_IN)
    assert jnp.allclose(out1, ref1, atol=2e-2, rtol=2e-2), "mismatch (B=8)"

    # Mid-size batch: bb=32, grid=2, ragged last block (18 rows).
    x2 = jax.random.uniform(kx2, (50, D_IN), jnp.float32)
    out2 = jax.block_until_ready(autoencoder_forward(x2, params))
    ref2 = reference_forward(x2, params)
    assert out2.shape == (50, D_IN)
    assert jnp.allclose(out2, ref2, atol=2e-2, rtol=2e-2), "mismatch (B=50)"

    print("KERNEL_OK")
</pallas_src>

<mosaic_0001>
module attributes {stable_mosaic.version = 11 : i64} {
  func.func @_autoencoder_kernel(%arg0: i32, %arg1: memref<8x784xf32, #tpu.memory_space<vmem>>, %arg2: memref<784x128xbf16, #tpu.memory_space<vmem>>, %arg3: memref<1x128xf32, #tpu.memory_space<vmem>>, %arg4: memref<128x32xbf16, #tpu.memory_space<vmem>>, %arg5: memref<1x32xf32, #tpu.memory_space<vmem>>, %arg6: memref<32x128xbf16, #tpu.memory_space<vmem>>, %arg7: memref<1x128xf32, #tpu.memory_space<vmem>>, %arg8: memref<128x784xbf16, #tpu.memory_space<vmem>>, %arg9: memref<1x784xf32, #tpu.memory_space<vmem>>, %arg10: memref<8x784xf32, #tpu.memory_space<vmem>>) attributes {dimension_semantics = [#tpu.dimension_semantics<parallel>], iteration_bounds = array<i64: 1>, scalar_prefetch = 0 : i64, scratch_operands = 0 : i64, tpu.core_type = #tpu.core_type<tc>, window_params = [{transform_indices = @transform_0, window_bounds = array<i64: 8, 784>}, {pipeline_mode = #tpu.pipeline_mode<synchronous>, transform_indices = @transform_1, window_bounds = array<i64: 784, 128>}, {pipeline_mode = #tpu.pipeline_mode<synchronous>, transform_indices = @transform_2, window_bounds = array<i64: 1, 128>}, {pipeline_mode = #tpu.pipeline_mode<synchronous>, transform_indices = @transform_3, window_bounds = array<i64: 128, 32>}, {pipeline_mode = #tpu.pipeline_mode<synchronous>, transform_indices = @transform_4, window_bounds = array<i64: 1, 32>}, {pipeline_mode = #tpu.pipeline_mode<synchronous>, transform_indices = @transform_5, window_bounds = array<i64: 32, 128>}, {pipeline_mode = #tpu.pipeline_mode<synchronous>, transform_indices = @transform_6, window_bounds = array<i64: 1, 128>}, {pipeline_mode = #tpu.pipeline_mode<synchronous>, transform_indices = @transform_7, window_bounds = array<i64: 128, 784>}, {pipeline_mode = #tpu.pipeline_mode<synchronous>, transform_indices = @transform_8, window_bounds = array<i64: 1, 784>}, {transform_indices = @transform_9, window_bounds = array<i64: 8, 784>}]} {
    %c0 = arith.constant 0 : index
    %c0_0 = arith.constant 0 : index
    %0 = vector.load %arg1[%c0, %c0_0] : memref<8x784xf32, #tpu.memory_space<vmem>>, vector<8x784xf32>
    %1 = arith.truncf %0 : vector<8x784xf32> to vector<8x784xbf16>
    %c0_1 = arith.constant 0 : index
    %c0_2 = arith.constant 0 : index
    %2 = vector.load %arg2[%c0_1, %c0_2] : memref<784x128xbf16, #tpu.memory_space<vmem>>, vector<784x128xbf16>
    %cst = arith.constant dense<0.000000e+00> : vector<8x128xf32>
    %3 = tpu.matmul %1, %2, %cst {dimension_numbers = #tpu.dot_dimension_numbers<[1], [0], [0], [1], [0, 0, 1, 1], [], []>} : vector<8x784xbf16>, vector<784x128xbf16>, vector<8x128xf32> -> vector<8x128xf32>
    %c0_3 = arith.constant 0 : index
    %c0_4 = arith.constant 0 : index
    %4 = vector.load %arg3[%c0_3, %c0_4] : memref<1x128xf32, #tpu.memory_space<vmem>>, vector<1x128xf32>
    %5 = vector.broadcast %4 : vector<1x128xf32> to vector<8x128xf32>
    %6 = arith.addf %3, %5 : vector<8x128xf32>
    %cst_5 = arith.constant 0.000000e+00 : f32
    %7 = vector.broadcast %cst_5 : f32 to vector<8x128xf32>
    %8 = arith.maximumf %6, %7 : vector<8x128xf32>
    %9 = arith.truncf %8 : vector<8x128xf32> to vector<8x128xbf16>
    %c0_6 = arith.constant 0 : index
    %c0_7 = arith.constant 0 : index
    %10 = vector.load %arg4[%c0_6, %c0_7] : memref<128x32xbf16, #tpu.memory_space<vmem>>, vector<128x32xbf16>
    %cst_8 = arith.constant dense<0.000000e+00> : vector<8x32xf32>
    %11 = tpu.matmul %9, %10, %cst_8 {dimension_numbers = #tpu.dot_dimension_numbers<[1], [0], [0], [1], [0, 0, 1, 1], [], []>} : vector<8x128xbf16>, vector<128x32xbf16>, vector<8x32xf32> -> vector<8x32xf32>
    %c0_9 = arith.constant 0 : index
    %c0_10 = arith.constant 0 : index
    %12 = vector.load %arg5[%c0_9, %c0_10] : memref<1x32xf32, #tpu.memory_space<vmem>>, vector<1x32xf32>
    %13 = vector.broadcast %12 : vector<1x32xf32> to vector<8x32xf32>
    %14 = arith.addf %11, %13 : vector<8x32xf32>
    %cst_11 = arith.constant 0.000000e+00 : f32
    %15 = vector.broadcast %cst_11 : f32 to vector<8x32xf32>
    %16 = arith.maximumf %14, %15 : vector<8x32xf32>
    %17 = arith.truncf %16 : vector<8x32xf32> to vector<8x32xbf16>
    %c0_12 = arith.constant 0 : index
    %c0_13 = arith.constant 0 : index
    %18 = vector.load %arg6[%c0_12, %c0_13] : memref<32x128xbf16, #tpu.memory_space<vmem>>, vector<32x128xbf16>
    %cst_14 = arith.constant dense<0.000000e+00> : vector<8x128xf32>
    %19 = tpu.matmul %17, %18, %cst_14 {dimension_numbers = #tpu.dot_dimension_numbers<[1], [0], [0], [1], [0, 0, 1, 1], [], []>} : vector<8x32xbf16>, vector<32x128xbf16>, vector<8x128xf32> -> vector<8x128xf32>
    %c0_15 = arith.constant 0 : index
    %c0_16 = arith.constant 0 : index
    %20 = vector.load %arg7[%c0_15, %c0_16] : memref<1x128xf32, #tpu.memory_space<vmem>>, vector<1x128xf32>
    %21 = vector.broadcast %20 : vector<1x128xf32> to vector<8x128xf32>
    %22 = arith.addf %19, %21 : vector<8x128xf32>
    %cst_17 = arith.constant 0.000000e+00 : f32
    %23 = vector.broadcast %cst_17 : f32 to vector<8x128xf32>
    %24 = arith.maximumf %22, %23 : vector<8x128xf32>
    %25 = arith.truncf %24 : vector<8x128xf32> to vector<8x128xbf16>
    %c0_18 = arith.constant 0 : index
    %c0_19 = arith.constant 0 : index
    %26 = vector.load %arg8[%c0_18, %c0_19] : memref<128x784xbf16, #tpu.memory_space<vmem>>, vector<128x784xbf16>
    %cst_20 = arith.constant dense<0.000000e+00> : vector<8x784xf32>
    %27 = tpu.matmul %25, %26, %cst_20 {dimension_numbers = #tpu.dot_dimension_numbers<[1], [0], [0], [1], [0, 0, 1, 1], [], []>} : vector<8x128xbf16>, vector<128x784xbf16>, vector<8x784xf32> -> vector<8x784xf32>
    %c0_21 = arith.constant 0 : index
    %c0_22 = arith.constant 0 : index
    %28 = vector.load %arg9[%c0_21, %c0_22] : memref<1x784xf32, #tpu.memory_space<vmem>>, vector<1x784xf32>
    %29 = vector.broadcast %28 : vector<1x784xf32> to vector<8x784xf32>
    %30 = arith.addf %27, %29 : vector<8x784xf32>
    %cst_23 = arith.constant 0.000000e+00 : f32
    %31 = vector.broadcast %cst_23 : f32 to vector<8x784xf32>
    %32 = arith.maximumf %30, %31 : vector<8x784xf32>
    %c0_24 = arith.constant 0 : index
    %c0_25 = arith.constant 0 : index
    %33 = vector.load %arg10[%c0_24, %c0_25] : memref<8x784xf32, #tpu.memory_space<vmem>>, vector<8x784xf32>
    tpu.vector_store %arg10[%c0_24, %c0_25], %32 {strides = array<i32>} : memref<8x784xf32, #tpu.memory_space<vmem>>, vector<8x784xf32>,
    return
  }
  func.func @transform_0(%arg0: i32) -> (i32, i32) {
    %c0_i32 = arith.constant 0 : i32
    %c0_i32_0 = arith.constant 0 : i32
    return %arg0, %c0_i32 : i32, i32
  }
  func.func @transform_1(%arg0: i32) -> (i32, i32) {
    %c0_i32 = arith.constant 0 : i32
    %c0_i32_0 = arith.constant 0 : i32
    %c0_i32_1 = arith.constant 0 : i32
    return %c0_i32, %c0_i32_0 : i32, i32
  }
  func.func @transform_2(%arg0: i32) -> (i32, i32) {
    %c0_i32 = arith.constant 0 : i32
    %c0_i32_0 = arith.constant 0 : i32
    %c0_i32_1 = arith.constant 0 : i32
    return %c0_i32, %c0_i32_0 : i32, i32
  }
  func.func @transform_3(%arg0: i32) -> (i32, i32) {
    %c0_i32 = arith.constant 0 : i32
    %c0_i32_0 = arith.constant 0 : i32
    %c0_i32_1 = arith.constant 0 : i32
    return %c0_i32, %c0_i32_0 : i32, i32
  }
  func.func @transform_4(%arg0: i32) -> (i32, i32) {
    %c0_i32 = arith.constant 0 : i32
    %c0_i32_0 = arith.constant 0 : i32
    %c0_i32_1 = arith.constant 0 : i32
    return %c0_i32, %c0_i32_0 : i32, i32
  }
  func.func @transform_5(%arg0: i32) -> (i32, i32) {
    %c0_i32 = arith.constant 0 : i32
    %c0_i32_0 = arith.constant 0 : i32
    %c0_i32_1 = arith.constant 0 : i32
    return %c0_i32, %c0_i32_0 : i32, i32
  }
  func.func @transform_6(%arg0: i32) -> (i32, i32) {
    %c0_i32 = arith.constant 0 : i32
    %c0_i32_0 = arith.constant 0 : i32
    %c0_i32_1 = arith.constant 0 : i32
    return %c0_i32, %c0_i32_0 : i32, i32
  }
  func.func @transform_7(%arg0: i32) -> (i32, i32) {
    %c0_i32 = arith.constant 0 : i32
    %c0_i32_0 = arith.constant 0 : i32
    %c0_i32_1 = arith.constant 0 : i32
    return %c0_i32, %c0_i32_0 : i32, i32
  }
  func.func @transform_8(%arg0: i32) -> (i32, i32) {
    %c0_i32 = arith.constant 0 : i32
    %c0_i32_0 = arith.constant 0 : i32
    %c0_i32_1 = arith.constant 0 : i32
    return %c0_i32, %c0_i32_0 : i32, i32
  }
  func.func @transform_9(%arg0: i32) -> (i32, i32) {
    %c0_i32 = arith.constant 0 : i32
    %c0_i32_0 = arith.constant 0 : i32
    return %arg0, %c0_i32 : i32, i32
  }
}

</mosaic_0001>

<llo_original>
// kernel: autoencoder_forward.1
$region0: #{autoencoder_forward.1}
  #allocation0 [shape = 'u32[]', space=smem, size = 0x4, offset = 0x4, fixed_abs, tag = 'smem constant byte address 0x4 - core index']
  #allocation1 [shape = 'u32[72,128]{1,0:T(1,128)}', space=vmem, size = 0x9000, scoped, tag = 'internal scratch']
  %s0 = inlined_call_operand.vmem [shape: f32[8,784], index: 0, kind: input, shape index: {}]
  %s1 = inlined_call_operand.vmem [shape: bf16[784,128], index: 1, kind: input, shape index: {}]
  %s2 = inlined_call_operand.vmem [shape: f32[1,128], index: 2, kind: input, shape index: {}]
  %s3 = inlined_call_operand.vmem [shape: bf16[128,32], index: 3, kind: input, shape index: {}]
  %s4 = inlined_call_operand.vmem [shape: f32[1,32], index: 4, kind: input, shape index: {}]
  %s5 = inlined_call_operand.vmem [shape: bf16[32,128], index: 5, kind: input, shape index: {}]
  %s6 = inlined_call_operand.vmem [shape: f32[1,128], index: 6, kind: input, shape index: {}]
  %s7 = inlined_call_operand.vmem [shape: bf16[128,784], index: 7, kind: input, shape index: {}]
  %s8 = inlined_call_operand.vmem [shape: f32[1,784], index: 8, kind: input, shape index: {}]
  %s9 = inlined_call_operand.hbm [shape: f32[8,784], index: 9, kind: output, shape index: {}]
  %s10 = sld [smem:[#allocation0]]
  $region46: #{autoencoder_forward.1} parent=0
    _
  %s12 = ssub.s32 1, %s10
  %s13 = scalar_select 0, %s12, %s10
  $region1: #{autoencoder_forward.1} parent=0
    #allocation2 [shape = 'u8[28672]{0}', space=vmem, size = 0x7000, scoped, tag = 'output window, operand 0, single buffered']
    #allocation3 [shape = 's32[1]{0}', space=sflag, size = 0x4, scoped, tag = 'scoped memory for autoencoder_forward.1']
    %14 = vsyncpa [#allocation3], 0
    // Predicated region
    $region2: #{autoencoder_forward.1} parent=1 // pred_check
      _
    $region3: #{autoencoder_forward.1} parent=1 // pred_check_branch
      %16 = sbr.rel (0) target = $region5
    $region4: #{autoencoder_forward.1} parent=1 // pred_region
      _
    $region5: #{autoencoder_forward.1} parent=1 // pred_fallthru
      _
    // Predicated region
    $region6: #{autoencoder_forward.1} parent=1 // pred_check
      _
    $region7: #{autoencoder_forward.1} parent=1 // pred_check_branch
      %18 = sbr.rel (0) target = $region9
    $region8: #{autoencoder_forward.1} parent=1 // pred_region
      _
    $region9: #{autoencoder_forward.1} parent=1 // pred_fallthru
      _
    // Predicated region
    $region10: #{autoencoder_forward.1} parent=1 // pred_check
      _
    $region11: #{autoencoder_forward.1} parent=1 // pred_check_branch
      %20 = sbr.rel (0) target = $region13
    $region12: #{autoencoder_forward.1} parent=1 // pred_region
      _
    $region13: #{autoencoder_forward.1} parent=1 // pred_fallthru
      _
    // Predicated region
    $region14: #{autoencoder_forward.1} parent=1 // pred_check
      _
    $region15: #{autoencoder_forward.1} parent=1 // pred_check_branch
      %22 = sbr.rel (0) target = $region17
    $region16: #{autoencoder_forward.1} parent=1 // pred_region
      _
    $region17: #{autoencoder_forward.1} parent=1 // pred_fallthru
      _
    // Predicated region
    $region18: #{autoencoder_forward.1} parent=1 // pred_check
      _
    $region19: #{autoencoder_forward.1} parent=1 // pred_check_branch
      %24 = sbr.rel (0) target = $region21
    $region20: #{autoencoder_forward.1} parent=1 // pred_region
      _
    $region21: #{autoencoder_forward.1} parent=1 // pred_fallthru
      _
    // Predicated region
    $region22: #{autoencoder_forward.1} parent=1 // pred_check
      _
    $region23: #{autoencoder_forward.1} parent=1 // pred_check_branch
      %26 = sbr.rel (0) target = $region25
    $region24: #{autoencoder_forward.1} parent=1 // pred_region
      _
    $region25: #{autoencoder_forward.1} parent=1 // pred_fallthru
      _
    // Predicated region
    $region26: #{autoencoder_forward.1} parent=1 // pred_check
      _
    $region27: #{autoencoder_forward.1} parent=1 // pred_check_branch
      %28 = sbr.rel (0) target = $region29
    $region28: #{autoencoder_forward.1} parent=1 // pred_region
      _
    $region29: #{autoencoder_forward.1} parent=1 // pred_fallthru
      _
    // Predicated region
    $region30: #{autoencoder_forward.1} parent=1 // pred_check
      _
    $region31: #{autoencoder_forward.1} parent=1 // pred_check_branch
      %30 = sbr.rel (0) target = $region33
    $region32: #{autoencoder_forward.1} parent=1 // pred_region
      _
    $region33: #{autoencoder_forward.1} parent=1 // pred_fallthru
      _
    // Predicated region
    $region34: #{autoencoder_forward.1} parent=1 // pred_check
      _
    $region35: #{autoencoder_forward.1} parent=1 // pred_check_branch
      %32 = sbr.rel (0) target = $region37
    $region36: #{autoencoder_forward.1} parent=1 // pred_region
      _
    $region37: #{autoencoder_forward.1} parent=1 // pred_fallthru
      _
    %v34 = vld [vmem:[%s0] sm:$0xff]
    %v35 = vld [vmem:[%s0 + $0x8] sm:$0xff]
    %v36 = vld [vmem:[%s0 + $0x10] sm:$0xff]
    %v37 = vld [vmem:[%s0 + $0x18] sm:$0xff]
    %v38 = vld [vmem:[%s0 + $0x20] sm:$0xff]
    %v39 = vld [vmem:[%s0 + $0x28] sm:$0xff]
    %v40 = vld [vmem:[%s0 + $0x30] sm:$0xff]
    %v41 = vpack.c.bf16 %v34, %v34
    %v42 = vpack.c.bf16 %v35, %v35
    %v43 = vpack.c.bf16 %v36, %v36
    %v44 = vpack.c.bf16 %v37, %v37
    %v45 = vpack.c.bf16 %v38, %v38
    %v46 = vpack.c.bf16 %v39, %v39
    %v47 = vpack.c.bf16 %v40, %v40
    %v48 = vld [vmem:[%s1] sm:$0xf]
    %v49 = vld [vmem:[%s1 + $0x4] sm:$0xf]
    %v50 = vld [vmem:[%s1 + $0x8] sm:$0xf]
    %v51 = vld [vmem:[%s1 + $0xc] sm:$0xf]
    %v52 = vld [vmem:[%s1 + $0x10] sm:$0xf]
    %v53 = vld [vmem:[%s1 + $0x14] sm:$0xf]
    %v54 = vld [vmem:[%s1 + $0x18] sm:$0xf]
    %v55 = vld [vmem:[%s1 + $0x1c] sm:$0xf]
    %v56 = vld [vmem:[%s1 + $0x20] sm:$0xf]
    %v57 = vld [vmem:[%s1 + $0x24] sm:$0xf]
    %v58 = vld [vmem:[%s1 + $0x28] sm:$0xf]
    %v59 = vld [vmem:[%s1 + $0x2c] sm:$0xf]
    %v60 = vld [vmem:[%s1 + $0x30] sm:$0xf]
    %v61 = vld [vmem:[%s1 + $0x34] sm:$0xf]
    %v62 = vld [vmem:[%s1 + $0x38] sm:$0xf]
    %v63 = vld [vmem:[%s1 + $0x3c] sm:$0xf]
    %v64 = vld [vmem:[%s1 + $0x40] sm:$0xf]
    %v65 = vld [vmem:[%s1 + $0x44] sm:$0xf]
    %v66 = vld [vmem:[%s1 + $0x48] sm:$0xf]
    %v67 = vld [vmem:[%s1 + $0x4c] sm:$0xf]
    %v68 = vld [vmem:[%s1 + $0x50] sm:$0xf]
    %v69 = vld [vmem:[%s1 + $0x54] sm:$0xf]
    %v70 = vld [vmem:[%s1 + $0x58] sm:$0xf]
    %v71 = vld [vmem:[%s1 + $0x5c] sm:$0xf]
    %v72 = vld [vmem:[%s1 + $0x60] sm:$0xf]
    %v73 = vld [vmem:[%s1 + $0x64] sm:$0xf]
    %v74 = vld [vmem:[%s1 + $0x68] sm:$0xf]
    %v75 = vld [vmem:[%s1 + $0x6c] sm:$0xf]
    %v76 = vld [vmem:[%s1 + $0x70] sm:$0xf]
    %v77 = vld [vmem:[%s1 + $0x74] sm:$0xf]
    %v78 = vld [vmem:[%s1 + $0x78] sm:$0xf]
    %v79 = vld [vmem:[%s1 + $0x7c] sm:$0xf]
    %v80 = vld [vmem:[%s1 + $0x80] sm:$0xf]
    %v81 = vld [vmem:[%s1 + $0x84] sm:$0xf]
    %v82 = vld [vmem:[%s1 + $0x88] sm:$0xf]
    %v83 = vld [vmem:[%s1 + $0x8c] sm:$0xf]
    %v84 = vld [vmem:[%s1 + $0x90] sm:$0xf]
    %v85 = vld [vmem:[%s1 + $0x94] sm:$0xf]
    %v86 = vld [vmem:[%s1 + $0x98] sm:$0xf]
    %v87 = vld [vmem:[%s1 + $0x9c] sm:$0xf]
    %v88 = vld [vmem:[%s1 + $0xa0] sm:$0xf]
    %v89 = vld [vmem:[%s1 + $0xa4] sm:$0xf]
    %v90 = vld [vmem:[%s1 + $0xa8] sm:$0xf]
    %v91 = vld [vmem:[%s1 + $0xac] sm:$0xf]
    %v92 = vld [vmem:[%s1 + $0xb0] sm:$0xf]
    %v93 = vld [vmem:[%s1 + $0xb4] sm:$0xf]
    %v94 = vld [vmem:[%s1 + $0xb8] sm:$0xf]
    %v95 = vld [vmem:[%s1 + $0xbc] sm:$0xf]
    %v96 = vld [vmem:[%s1 + $0xc0] sm:$0xf]
    %v97 = vld [vmem:[%s1 + $0xc4] sm:$0xf]
    %v98 = vld [vmem:[%s1 + $0xc8] sm:$0xf]
    %v99 = vld [vmem:[%s1 + $0xcc] sm:$0xf]
    %v100 = vld [vmem:[%s1 + $0xd0] sm:$0xf]
    %v101 = vld [vmem:[%s1 + $0xd4] sm:$0xf]
    %v102 = vld [vmem:[%s1 + $0xd8] sm:$0xf]
    %v103 = vld [vmem:[%s1 + $0xdc] sm:$0xf]
    %v104 = vld [vmem:[%s1 + $0xe0] sm:$0xf]
    %v105 = vld [vmem:[%s1 + $0xe4] sm:$0xf]
    %v106 = vld [vmem:[%s1 + $0xe8] sm:$0xf]
    %v107 = vld [vmem:[%s1 + $0xec] sm:$0xf]
    %v108 = vld [vmem:[%s1 + $0xf0] sm:$0xf]
    %v109 = vld [vmem:[%s1 + $0xf4] sm:$0xf]
    %v110 = vld [vmem:[%s1 + $0xf8] sm:$0xf]
    %v111 = vld [vmem:[%s1 + $0xfc] sm:$0xf]
    %v112 = vld [vmem:[%s1 + $0x100] sm:$0xf]
    %v113 = vld [vmem:[%s1 + $0x104] sm:$0xf]
    %v114 = vld [vmem:[%s1 + $0x108] sm:$0xf]
    %v115 = vld [vmem:[%s1 + $0x10c] sm:$0xf]
    %v116 = vld [vmem:[%s1 + $0x110] sm:$0xf]
    %v117 = vld [vmem:[%s1 + $0x114] sm:$0xf]
    %v118 = vld [vmem:[%s1 + $0x118] sm:$0xf]
    %v119 = vld [vmem:[%s1 + $0x11c] sm:$0xf]
    %v120 = vld [vmem:[%s1 + $0x120] sm:$0xf]
    %v121 = vld [vmem:[%s1 + $0x124] sm:$0xf]
    %v122 = vld [vmem:[%s1 + $0x128] sm:$0xf]
    %v123 = vld [vmem:[%s1 + $0x12c] sm:$0xf]
    %v124 = vld [vmem:[%s1 + $0x130] sm:$0xf]
    %v125 = vld [vmem:[%s1 + $0x134] sm:$0xf]
    %v126 = vld [vmem:[%s1 + $0x138] sm:$0xf]
    %v127 = vld [vmem:[%s1 + $0x13c] sm:$0xf]
    %v128 = vld [vmem:[%s1 + $0x140] sm:$0xf]
    %v129 = vld [vmem:[%s1 + $0x144] sm:$0xf]
    %v130 = vld [vmem:[%s1 + $0x148] sm:$0xf]
    %v131 = vld [vmem:[%s1 + $0x14c] sm:$0xf]
    %v132 = vld [vmem:[%s1 + $0x150] sm:$0xf]
    %v133 = vld [vmem:[%s1 + $0x154] sm:$0xf]
    %v134 = vld [vmem:[%s1 + $0x158] sm:$0xf]
    %v135 = vld [vmem:[%s1 + $0x15c] sm:$0xf]
    %v136 = vld [vmem:[%s1 + $0x160] sm:$0xf]
    %v137 = vld [vmem:[%s1 + $0x164] sm:$0xf]
    %v138 = vld [vmem:[%s1 + $0x168] sm:$0xf]
    %v139 = vld [vmem:[%s1 + $0x16c] sm:$0xf]
    %v140 = vld [vmem:[%s1 + $0x170] sm:$0xf]
    %v141 = vld [vmem:[%s1 + $0x174] sm:$0xf]
    %v142 = vld [vmem:[%s1 + $0x178] sm:$0xf]
    %v143 = vld [vmem:[%s1 + $0x17c] sm:$0xf]
    %v144 = vld [vmem:[%s1 + $0x180] sm:$0xf]
    %v145 = vld [vmem:[%s1 + $0x184] sm:$0xf]
    %v146 = vld [vmem:[%s2] sm:$0x1]
    %v148 = vperm.slane %v146, 0
    %v248 = vunpack.c.l.b16 %v48
    %v249 = vunpack.c.l.b16 %v49
    %v250 = vunpack.c.l.b16 %v50
    %v251 = vunpack.c.l.b16 %v51
    %v252 = vunpack.c.l.b16 %v52
    %v253 = vunpack.c.l.b16 %v53
    %v254 = vunpack.c.l.b16 %v54
    %v255 = vunpack.c.l.b16 %v55
    %v256 = vunpack.c.l.b16 %v56
    %v257 = vunpack.c.l.b16 %v57
    %v258 = vunpack.c.l.b16 %v58
    %v259 = vunpack.c.l.b16 %v59
    %v260 = vunpack.c.l.b16 %v60
    %v261 = vunpack.c.l.b16 %v61
    %v262 = vunpack.c.l.b16 %v62
    %v263 = vunpack.c.l.b16 %v63
    %v264 = vunpack.c.l.b16 %v64
    %v265 = vunpack.c.l.b16 %v65
    %v266 = vunpack.c.l.b16 %v66
    %v267 = vunpack.c.l.b16 %v67
    %v268 = vunpack.c.l.b16 %v68
    %v269 = vunpack.c.l.b16 %v69
    %v270 = vunpack.c.l.b16 %v70
    %v271 = vunpack.c.l.b16 %v71
    %v272 = vunpack.c.l.b16 %v72
    %v273 = vunpack.c.l.b16 %v73
    %v274 = vunpack.c.l.b16 %v74
    %v275 = vunpack.c.l.b16 %v75
    %v276 = vunpack.c.l.b16 %v76
    %v277 = vunpack.c.l.b16 %v77
    %v278 = vunpack.c.l.b16 %v78
    %v279 = vunpack.c.l.b16 %v79
    %v280 = vunpack.c.l.b16 %v80
    %v281 = vunpack.c.l.b16 %v81
    %v282 = vunpack.c.l.b16 %v82
    %v283 = vunpack.c.l.b16 %v83
    %v284 = vunpack.c.l.b16 %v84
    %v285 = vunpack.c.l.b16 %v85
    %v286 = vunpack.c.l.b16 %v86
    %v287 = vunpack.c.l.b16 %v87
    %v288 = vunpack.c.l.b16 %v88
    %v289 = vunpack.c.l.b16 %v89
    %v290 = vunpack.c.l.b16 %v90
    %v291 = vunpack.c.l.b16 %v91
    %v292 = vunpack.c.l.b16 %v92
    %v293 = vunpack.c.l.b16 %v93
    %v294 = vunpack.c.l.b16 %v94
    %v295 = vunpack.c.l.b16 %v95
    %v296 = vunpack.c.l.b16 %v96
    %v297 = vunpack.c.l.b16 %v97
    %v298 = vunpack.c.l.b16 %v98
    %v299 = vunpack.c.l.b16 %v99
    %v300 = vunpack.c.l.b16 %v100
    %v301 = vunpack.c.l.b16 %v101
    %v302 = vunpack.c.l.b16 %v102
    %v303 = vunpack.c.l.b16 %v103
    %v304 = vunpack.c.l.b16 %v104
    %v305 = vunpack.c.l.b16 %v105
    %v306 = vunpack.c.l.b16 %v106
    %v307 = vunpack.c.l.b16 %v107
    %v308 = vunpack.c.l.b16 %v108
    %v309 = vunpack.c.l.b16 %v109
    %v310 = vunpack.c.l.b16 %v110
    %v311 = vunpack.c.l.b16 %v111
    %v312 = vunpack.c.l.b16 %v112
    %v313 = vunpack.c.l.b16 %v113
    %v314 = vunpack.c.l.b16 %v114
    %v315 = vunpack.c.l.b16 %v115
    %v316 = vunpack.c.l.b16 %v116
    %v317 = vunpack.c.l.b16 %v117
    %v318 = vunpack.c.l.b16 %v118
    %v319 = vunpack.c.l.b16 %v119
    %v320 = vunpack.c.l.b16 %v120
    %v321 = vunpack.c.l.b16 %v121
    %v322 = vunpack.c.l.b16 %v122
    %v323 = vunpack.c.l.b16 %v123
    %v324 = vunpack.c.l.b16 %v124
    %v325 = vunpack.c.l.b16 %v125
    %v326 = vunpack.c.l.b16 %v126
    %v327 = vunpack.c.l.b16 %v127
    %v328 = vunpack.c.l.b16 %v128
    %v329 = vunpack.c.l.b16 %v129
    %v330 = vunpack.c.l.b16 %v130
    %v331 = vunpack.c.l.b16 %v131
    %v332 = vunpack.c.l.b16 %v132
    %v333 = vunpack.c.l.b16 %v133
    %v334 = vunpack.c.l.b16 %v134
    %v335 = vunpack.c.l.b16 %v135
    %v336 = vunpack.c.l.b16 %v136
    %v337 = vunpack.c.l.b16 %v137
    %v338 = vunpack.c.l.b16 %v138
    %v339 = vunpack.c.l.b16 %v139
    %v340 = vunpack.c.l.b16 %v140
    %v341 = vunpack.c.l.b16 %v141
    %v342 = vunpack.c.l.b16 %v142
    %v343 = vunpack.c.l.b16 %v143
    %v344 = vunpack.c.l.b16 %v144
    %v345 = vunpack.c.l.b16 %v145
    %v346 = vpack.c.b16 %v249, %v248
    %v347 = vpack.c.b16 %v251, %v250
    %v348 = vpack.c.b16 %v253, %v252
    %v349 = vpack.c.b16 %v255, %v254
    %v350 = vpack.c.b16 %v257, %v256
    %v351 = vpack.c.b16 %v259, %v258
    %v352 = vpack.c.b16 %v261, %v260
    %v353 = vpack.c.b16 %v263, %v262
    %v354 = vpack.c.b16 %v265, %v264
    %v355 = vpack.c.b16 %v267, %v266
    %v356 = vpack.c.b16 %v269, %v268
    %v357 = vpack.c.b16 %v271, %v270
    %v358 = vpack.c.b16 %v273, %v272
    %v359 = vpack.c.b16 %v275, %v274
    %v360 = vpack.c.b16 %v277, %v276
    %v361 = vpack.c.b16 %v279, %v278
    %v362 = vpack.c.b16 %v281, %v280
    %v363 = vpack.c.b16 %v283, %v282
    %v364 = vpack.c.b16 %v285, %v284
    %v365 = vpack.c.b16 %v287, %v286
    %v366 = vpack.c.b16 %v289, %v288
    %v367 = vpack.c.b16 %v291, %v290
    %v368 = vpack.c.b16 %v293, %v292
    %v369 = vpack.c.b16 %v295, %v294
    %v370 = vpack.c.b16 %v297, %v296
    %v371 = vpack.c.b16 %v299, %v298
    %v372 = vpack.c.b16 %v301, %v300
    %v373 = vpack.c.b16 %v303, %v302
    %v374 = vpack.c.b16 %v305, %v304
    %v375 = vpack.c.b16 %v307, %v306
    %v376 = vpack.c.b16 %v309, %v308
    %v377 = vpack.c.b16 %v311, %v310
    %v378 = vpack.c.b16 %v313, %v312
    %v379 = vpack.c.b16 %v315, %v314
    %v380 = vpack.c.b16 %v317, %v316
    %v381 = vpack.c.b16 %v319, %v318
    %v382 = vpack.c.b16 %v321, %v320
    %v383 = vpack.c.b16 %v323, %v322
    %v384 = vpack.c.b16 %v325, %v324
    %v385 = vpack.c.b16 %v327, %v326
    %v386 = vpack.c.b16 %v329, %v328
    %v387 = vpack.c.b16 %v331, %v330
    %v388 = vpack.c.b16 %v333, %v332
    %v389 = vpack.c.b16 %v335, %v334
    %v390 = vpack.c.b16 %v337, %v336
    %v391 = vpack.c.b16 %v339, %v338
    %v392 = vpack.c.b16 %v341, %v340
    %v393 = vpack.c.b16 %v343, %v342
    %v394 = vpack.c.b16 %v345, %v344
    %vm444 = vcmask 130048
    %v446 = vsel %vm444, %v47, 0
    %448 = vmatpush.bf16.msra.mxu0 %v353
    %449 = vmatpush.bf16.msra.mxu0 %v352
    %450 = vmatpush.bf16.msra.mxu0 %v351
    %451 = vmatpush.bf16.msra.mxu0 %v350
    %452 = vmatpush.bf16.msra.mxu0 %v349
    %453 = vmatpush.bf16.msra.mxu0 %v348
    %454 = vmatpush.bf16.msra.mxu0 %v347
    %455 = vmatpush.bf16.msra.mxu0 %v346
    %456 = vmatmul.bf16.gmra.mxu0 %v41
    %v457 = vpop.f32.mrf.mxu0
    %v458 = vadd.f32 %v148, %v457
    %v459 = vpop.f32.mrf.mxu0
    %460 = vdwg.mxu0
    %461 = vmatpush.bf16.msra.mxu0 %v361
    %462 = vmatpush.bf16.msra.mxu0 %v360
    %463 = vmatpush.bf16.msra.mxu0 %v359
    %464 = vmatpush.bf16.msra.mxu0 %v358
    %465 = vmatpush.bf16.msra.mxu0 %v357
    %466 = vmatpush.bf16.msra.mxu0 %v356
    %467 = vmatpush.bf16.msra.mxu0 %v355
    %468 = vmatpush.bf16.msra.mxu0 %v354
    %469 = vmatmul.bf16.gmra.mxu0 %v42
    %v470 = vpop.f32.mrf.mxu0
    %v471 = vadd.f32 %v458, %v470
    %v472 = vpop.f32.mrf.mxu0
    %473 = vdwg.mxu0
    %474 = vmatpush.bf16.msra.mxu0 %v369
    %475 = vmatpush.bf16.msra.mxu0 %v368
    %476 = vmatpush.bf16.msra.mxu0 %v367
    %477 = vmatpush.bf16.msra.mxu0 %v366
    %478 = vmatpush.bf16.msra.mxu0 %v365
    %479 = vmatpush.bf16.msra.mxu0 %v364
    %480 = vmatpush.bf16.msra.mxu0 %v363
    %481 = vmatpush.bf16.msra.mxu0 %v362
    %482 = vmatmul.bf16.gmra.mxu0 %v43
    %v483 = vpop.f32.mrf.mxu0
    %v484 = vadd.f32 %v471, %v483
    %v485 = vpop.f32.mrf.mxu0
    %486 = vdwg.mxu0
    %487 = vmatpush.bf16.msra.mxu0 %v377
    %488 = vmatpush.bf16.msra.mxu0 %v376
    %489 = vmatpush.bf16.msra.mxu0 %v375
    %490 = vmatpush.bf16.msra.mxu0 %v374
    %491 = vmatpush.bf16.msra.mxu0 %v373
    %492 = vmatpush.bf16.msra.mxu0 %v372
    %493 = vmatpush.bf16.msra.mxu0 %v371
    %494 = vmatpush.bf16.msra.mxu0 %v370
    %495 = vmatmul.bf16.gmra.mxu0 %v44
    %v496 = vpop.f32.mrf.mxu0
    %v497 = vadd.f32 %v484, %v496
    %v498 = vpop.f32.mrf.mxu0
    %499 = vdwg.mxu0
    %500 = vmatpush.bf16.msra.mxu0 %v385
    %501 = vmatpush.bf16.msra.mxu0 %v384
    %502 = vmatpush.bf16.msra.mxu0 %v383
    %503 = vmatpush.bf16.msra.mxu0 %v382
    %504 = vmatpush.bf16.msra.mxu0 %v381
    %505 = vmatpush.bf16.msra.mxu0 %v380
    %506 = vmatpush.bf16.msra.mxu0 %v379
    %507 = vmatpush.bf16.msra.mxu0 %v378
    %508 = vmatmul.bf16.gmra.mxu0 %v45
    %v509 = vpop.f32.mrf.mxu0
    %v510 = vadd.f32 %v497, %v509
    %v511 = vpop.f32.mrf.mxu0
    %512 = vdwg.mxu0
    %513 = vmatpush.bf16.msra.mxu0 %v393
    %514 = vmatpush.bf16.msra.mxu0 %v392
    %515 = vmatpush.bf16.msra.mxu0 %v391
    %516 = vmatpush.bf16.msra.mxu0 %v390
    %517 = vmatpush.bf16.msra.mxu0 %v389
    %518 = vmatpush.bf16.msra.mxu0 %v388
    %519 = vmatpush.bf16.msra.mxu0 %v387
    %520 = vmatpush.bf16.msra.mxu0 %v386
    %521 = vmatmul.bf16.gmra.mxu0 %v46
    %v522 = vpop.f32.mrf.mxu0
    %v523 = vadd.f32 %v510, %v522
    %v524 = vpop.f32.mrf.mxu0
    %525 = vdwg.mxu0
    %526 = vmatpush.bf16.msra.mxu0 0
    %527 = vmatpush.bf16.msra.mxu0 0
    %528 = vmatpush.bf16.msra.mxu0 0
    %529 = vmatpush.bf16.msra.mxu0 0
    %530 = vmatpush.bf16.msra.mxu0 0
    %531 = vmatpush.bf16.msra.mxu0 0
    %532 = vmatpush.bf16.msra.mxu0 0
    %533 = vmatpush.bf16.msra.mxu0 %v394
    %534 = vmatmul.bf16.gmra.mxu0 %v446
    %v535 = vpop.f32.mrf.mxu0
    %v536 = vadd.f32 %v523, %v535
    %v537 = vpop.f32.mrf.mxu0
    %538 = vdwg.mxu0
    %v539 = vmax.f32 %v536, 0.0
    %v540 = vpack.c.bf16 %v539, %v539
    %v541 = vld [vmem:[%s3] sm:$0xf]
    %v542 = vld [vmem:[%s3 + $0x4] sm:$0xf]
    %v543 = vld [vmem:[%s3 + $0x8] sm:$0xf]
    %v544 = vld [vmem:[%s3 + $0xc] sm:$0xf]
    %v545 = vld [vmem:[%s3 + $0x10] sm:$0xf]
    %v546 = vld [vmem:[%s3 + $0x14] sm:$0xf]
    %v547 = vld [vmem:[%s3 + $0x18] sm:$0xf]
    %v548 = vld [vmem:[%s3 + $0x1c] sm:$0xf]
    %v549 = vld [vmem:[%s3 + $0x20] sm:$0xf]
    %v550 = vld [vmem:[%s3 + $0x24] sm:$0xf]
    %v551 = vld [vmem:[%s3 + $0x28] sm:$0xf]
    %v552 = vld [vmem:[%s3 + $0x2c] sm:$0xf]
    %v553 = vld [vmem:[%s3 + $0x30] sm:$0xf]
    %v554 = vld [vmem:[%s3 + $0x34] sm:$0xf]
    %v555 = vld [vmem:[%s3 + $0x38] sm:$0xf]
    %v556 = vld [vmem:[%s3 + $0x3c] sm:$0xf]
    %v557 = vld [vmem:[%s4] sm:$0x1]
    %v559 = vperm.slane %v557, 0
    %v577 = vunpack.c.l.b16 %v541
    %v578 = vunpack.c.l.b16 %v542
    %v579 = vunpack.c.l.b16 %v543
    %v580 = vunpack.c.l.b16 %v544
    %v581 = vunpack.c.l.b16 %v545
    %v582 = vunpack.c.l.b16 %v546
    %v583 = vunpack.c.l.b16 %v547
    %v584 = vunpack.c.l.b16 %v548
    %v585 = vunpack.c.l.b16 %v549
    %v586 = vunpack.c.l.b16 %v550
    %v587 = vunpack.c.l.b16 %v551
    %v588 = vunpack.c.l.b16 %v552
    %v589 = vunpack.c.l.b16 %v553
    %v590 = vunpack.c.l.b16 %v554
    %v591 = vunpack.c.l.b16 %v555
    %v592 = vunpack.c.l.b16 %v556
    %v593 = vpack.c.b16 %v578, %v577
    %v594 = vpack.c.b16 %v580, %v579
    %v595 = vpack.c.b16 %v582, %v581
    %v596 = vpack.c.b16 %v584, %v583
    %v597 = vpack.c.b16 %v586, %v585
    %v598 = vpack.c.b16 %v588, %v587
    %v599 = vpack.c.b16 %v590, %v589
    %v600 = vpack.c.b16 %v592, %v591
    %609 = vmatpush.bf16.msra.mxu0 %v600
    %610 = vmatpush.bf16.msra.mxu0 %v599
    %611 = vmatpush.bf16.msra.mxu0 %v598
    %612 = vmatpush.bf16.msra.mxu0 %v597
    %613 = vmatpush.bf16.msra.mxu0 %v596
    %614 = vmatpush.bf16.msra.mxu0 %v595
    %615 = vmatpush.bf16.msra.mxu0 %v594
    %616 = vmatpush.bf16.msra.mxu0 %v593
    %617 = vmatmul.bf16.gmra.mxu0 %v540
    %v618 = vpop.f32.mrf.mxu0
    %v619 = vadd.f32 %v559, %v618
    %v620 = vpop.f32.mrf.mxu0
    %621 = vdwg.mxu0
    %v622 = vmax.f32 %v619, 0.0
    %v623 = vpack.c.bf16 %v622, %v622
    %v624 = vld [vmem:[%s5] sm:$0xf]
    %v625 = vld [vmem:[%s5 + $0x4] sm:$0xf]
    %v626 = vld [vmem:[%s5 + $0x8] sm:$0xf]
    %v627 = vld [vmem:[%s5 + $0xc] sm:$0xf]
    %v628 = vld [vmem:[%s6] sm:$0x1]
    %v630 = vperm.slane %v628, 0
    %v636 = vunpack.c.l.b16 %v624
    %v637 = vunpack.c.l.b16 %v625
    %v638 = vunpack.c.l.b16 %v626
    %v639 = vunpack.c.l.b16 %v627
    %v640 = vpack.c.b16 %v637, %v636
    %v641 = vpack.c.b16 %v639, %v638
    %vm644 = vcmask 261120
    %v646 = vsel %vm644, %v623, 0
    %648 = vmatpush.bf16.msra.mxu0 0
    %649 = vmatpush.bf16.msra.mxu0 0
    %650 = vmatpush.bf16.msra.mxu0 0
    %651 = vmatpush.bf16.msra.mxu0 0
    %652 = vmatpush.bf16.msra.mxu0 0
    %653 = vmatpush.bf16.msra.mxu0 0
    %654 = vmatpush.bf16.msra.mxu0 %v641
    %655 = vmatpush.bf16.msra.mxu0 %v640
    %656 = vmatmul.bf16.gmra.mxu0 %v646
    %v657 = vpop.f32.mrf.mxu0
    %v658 = vadd.f32 %v630, %v657
    %v659 = vpop.f32.mrf.mxu0
    %660 = vdwg.mxu0
    %v661 = vmax.f32 %v658, 0.0
    %v662 = vpack.c.bf16 %v661, %v661
    %v663 = vld [vmem:[%s7] sm:$0xff]
    %v664 = vld [vmem:[%s7 + $0x8] sm:$0xff]
    %v665 = vld [vmem:[%s7 + $0x10] sm:$0xff]
    %v666 = vld [vmem:[%s7 + $0x18] sm:$0xf]
    %v667 = vld [vmem:[%s7 + $0x1c] sm:$0xff]
    %v668 = vld [vmem:[%s7 + $0x24] sm:$0xff]
    %v669 = vld [vmem:[%s7 + $0x2c] sm:$0xff]
    %v670 = vld [vmem:[%s7 + $0x34] sm:$0xf]
    %v671 = vld [vmem:[%s7 + $0x38] sm:$0xff]
    %v672 = vld [vmem:[%s7 + $0x40] sm:$0xff]
    %v673 = vld [vmem:[%s7 + $0x48] sm:$0xff]
    %v674 = vld [vmem:[%s7 + $0x50] sm:$0xf]
    %v675 = vld [vmem:[%s7 + $0x54] sm:$0xff]
    %v676 = vld [vmem:[%s7 + $0x5c] sm:$0xff]
    %v677 = vld [vmem:[%s7 + $0x64] sm:$0xff]
    %v678 = vld [vmem:[%s7 + $0x6c] sm:$0xf]
    %v679 = vld [vmem:[%s7 + $0x70] sm:$0xff]
    %v680 = vld [vmem:[%s7 + $0x78] sm:$0xff]
    %v681 = vld [vmem:[%s7 + $0x80] sm:$0xff]
    %v682 = vld [vmem:[%s7 + $0x88] sm:$0xf]
    %v683 = vld [vmem:[%s7 + $0x8c] sm:$0xff]
    %v684 = vld [vmem:[%s7 + $0x94] sm:$0xff]
    %v685 = vld [vmem:[%s7 + $0x9c] sm:$0xff]
    %v686 = vld [vmem:[%s7 + $0xa4] sm:$0xf]
    %v687 = vld [vmem:[%s7 + $0xa8] sm:$0xff]
    %v688 = vld [vmem:[%s7 + $0xb0] sm:$0xff]
    %v689 = vld [vmem:[%s7 + $0xb8] sm:$0xff]
    %v690 = vld [vmem:[%s7 + $0xc0] sm:$0xf]
    %v691 = vld [vmem:[%s7 + $0xc4] sm:$0xff]
    %v692 = vld [vmem:[%s7 + $0xcc] sm:$0xff]
    %v693 = vld [vmem:[%s7 + $0xd4] sm:$0xff]
    %v694 = vld [vmem:[%s7 + $0xdc] sm:$0xf]
    %v695 = vld [vmem:[%s7 + $0xe0] sm:$0xff]
    %v696 = vld [vmem:[%s7 + $0xe8] sm:$0xff]
    %v697 = vld [vmem:[%s7 + $0xf0] sm:$0xff]
    %v698 = vld [vmem:[%s7 + $0xf8] sm:$0xf]
    %v699 = vld [vmem:[%s7 + $0xfc] sm:$0xff]
    %v700 = vld [vmem:[%s7 + $0x104] sm:$0xff]
    %v701 = vld [vmem:[%s7 + $0x10c] sm:$0xff]
    %v702 = vld [vmem:[%s7 + $0x114] sm:$0xf]
    %v703 = vld [vmem:[%s7 + $0x118] sm:$0xff]
    %v704 = vld [vmem:[%s7 + $0x120] sm:$0xff]
    %v705 = vld [vmem:[%s7 + $0x128] sm:$0xff]
    %v706 = vld [vmem:[%s7 + $0x130] sm:$0xf]
    %v707 = vld [vmem:[%s7 + $0x134] sm:$0xff]
    %v708 = vld [vmem:[%s7 + $0x13c] sm:$0xff]
    %v709 = vld [vmem:[%s7 + $0x144] sm:$0xff]
    %v710 = vld [vmem:[%s7 + $0x14c] sm:$0xf]
    %v711 = vld [vmem:[%s7 + $0x150] sm:$0xff]
    %v712 = vld [vmem:[%s7 + $0x158] sm:$0xff]
    %v713 = vld [vmem:[%s7 + $0x160] sm:$0xff]
    %v714 = vld [vmem:[%s7 + $0x168] sm:$0xf]
    %v715 = vld [vmem:[%s7 + $0x16c] sm:$0xff]
    %v716 = vld [vmem:[%s7 + $0x174] sm:$0xff]
    %v717 = vld [vmem:[%s7 + $0x17c] sm:$0xff]
    %v718 = vld [vmem:[%s7 + $0x184] sm:$0xf]
    %v719 = vld [vmem:[%s7 + $0x188] sm:$0xff]
    %v720 = vld [vmem:[%s7 + $0x190] sm:$0xff]
    %v721 = vld [vmem:[%s7 + $0x198] sm:$0xff]
    %v722 = vld [vmem:[%s7 + $0x1a0] sm:$0xf]
    %v723 = vld [vmem:[%s7 + $0x1a4] sm:$0xff]
    %v724 = vld [vmem:[%s7 + $0x1ac] sm:$0xff]
    %v725 = vld [vmem:[%s7 + $0x1b4] sm:$0xff]
    %v726 = vld [vmem:[%s7 + $0x1bc] sm:$0xf]
    %v727 = vld [vmem:[%s8] sm:$0x7f]
    %v729 = vperm.slane %v727, 0
    %v730 = vperm.slane %v727, 1
    %v731 = vperm.slane %v727, 2
    %v732 = vperm.slane %v727, 3
    %v733 = vperm.slane %v727, 4
    %v734 = vperm.slane %v727, 5
    %v735 = vperm.slane %v727, 6
    %v807 = vunpack.c.l.b16 %v663
    %v808 = vunpack.c.h.b16 %v663
    %v809 = vunpack.c.l.b16 %v664
    %v810 = vunpack.c.h.b16 %v664
    %v811 = vunpack.c.l.b16 %v665
    %v812 = vunpack.c.h.b16 %v665
    %v813 = vunpack.c.l.b16 %v666
    %v814 = vunpack.c.l.b16 %v667
    %v815 = vunpack.c.h.b16 %v667
    %v816 = vunpack.c.l.b16 %v668
    %v817 = vunpack.c.h.b16 %v668
    %v818 = vunpack.c.l.b16 %v669
    %v819 = vunpack.c.h.b16 %v669
    %v820 = vunpack.c.l.b16 %v670
    %v821 = vunpack.c.l.b16 %v671
    %v822 = vunpack.c.h.b16 %v671
    %v823 = vunpack.c.l.b16 %v672
    %v824 = vunpack.c.h.b16 %v672
    %v825 = vunpack.c.l.b16 %v673
    %v826 = vunpack.c.h.b16 %v673
    %v827 = vunpack.c.l.b16 %v674
    %v828 = vunpack.c.l.b16 %v675
    %v829 = vunpack.c.h.b16 %v675
    %v830 = vunpack.c.l.b16 %v676
    %v831 = vunpack.c.h.b16 %v676
    %v832 = vunpack.c.l.b16 %v677
    %v833 = vunpack.c.h.b16 %v677
    %v834 = vunpack.c.l.b16 %v678
    %v835 = vunpack.c.l.b16 %v679
    %v836 = vunpack.c.h.b16 %v679
    %v837 = vunpack.c.l.b16 %v680
    %v838 = vunpack.c.h.b16 %v680
    %v839 = vunpack.c.l.b16 %v681
    %v840 = vunpack.c.h.b16 %v681
    %v841 = vunpack.c.l.b16 %v682
    %v842 = vunpack.c.l.b16 %v683
    %v843 = vunpack.c.h.b16 %v683
    %v844 = vunpack.c.l.b16 %v684
    %v845 = vunpack.c.h.b16 %v684
    %v846 = vunpack.c.l.b16 %v685
    %v847 = vunpack.c.h.b16 %v685
    %v848 = vunpack.c.l.b16 %v686
    %v849 = vunpack.c.l.b16 %v687
    %v850 = vunpack.c.h.b16 %v687
    %v851 = vunpack.c.l.b16 %v688
    %v852 = vunpack.c.h.b16 %v688
    %v853 = vunpack.c.l.b16 %v689
    %v854 = vunpack.c.h.b16 %v689
    %v855 = vunpack.c.l.b16 %v690
    %v856 = vunpack.c.l.b16 %v691
    %v857 = vunpack.c.h.b16 %v691
    %v858 = vunpack.c.l.b16 %v692
    %v859 = vunpack.c.h.b16 %v692
    %v860 = vunpack.c.l.b16 %v693
    %v861 = vunpack.c.h.b16 %v693
    %v862 = vunpack.c.l.b16 %v694
    %v863 = vunpack.c.l.b16 %v695
    %v864 = vunpack.c.h.b16 %v695
    %v865 = vunpack.c.l.b16 %v696
    %v866 = vunpack.c.h.b16 %v696
    %v867 = vunpack.c.l.b16 %v697
    %v868 = vunpack.c.h.b16 %v697
    %v869 = vunpack.c.l.b16 %v698
    %v870 = vunpack.c.l.b16 %v699
    %v871 = vunpack.c.h.b16 %v699
    %v872 = vunpack.c.l.b16 %v700
    %v873 = vunpack.c.h.b16 %v700
    %v874 = vunpack.c.l.b16 %v701
    %v875 = vunpack.c.h.b16 %v701
    %v876 = vunpack.c.l.b16 %v702
    %v877 = vunpack.c.l.b16 %v703
    %v878 = vunpack.c.h.b16 %v703
    %v879 = vunpack.c.l.b16 %v704
    %v880 = vunpack.c.h.b16 %v704
    %v881 = vunpack.c.l.b16 %v705
    %v882 = vunpack.c.h.b16 %v705
    %v883 = vunpack.c.l.b16 %v706
    %v884 = vunpack.c.l.b16 %v707
    %v885 = vunpack.c.h.b16 %v707
    %v886 = vunpack.c.l.b16 %v708
    %v887 = vunpack.c.h.b16 %v708
    %v888 = vunpack.c.l.b16 %v709
    %v889 = vunpack.c.h.b16 %v709
    %v890 = vunpack.c.l.b16 %v710
    %v891 = vunpack.c.l.b16 %v711
    %v892 = vunpack.c.h.b16 %v711
    %v893 = vunpack.c.l.b16 %v712
    %v894 = vunpack.c.h.b16 %v712
    %v895 = vunpack.c.l.b16 %v713
    %v896 = vunpack.c.h.b16 %v713
    %v897 = vunpack.c.l.b16 %v714
    %v898 = vunpack.c.l.b16 %v715
    %v899 = vunpack.c.h.b16 %v715
    %v900 = vunpack.c.l.b16 %v716
    %v901 = vunpack.c.h.b16 %v716
    %v902 = vunpack.c.l.b16 %v717
    %v903 = vunpack.c.h.b16 %v717
    %v904 = vunpack.c.l.b16 %v718
    %v905 = vunpack.c.l.b16 %v719
    %v906 = vunpack.c.h.b16 %v719
    %v907 = vunpack.c.l.b16 %v720
    %v908 = vunpack.c.h.b16 %v720
    %v909 = vunpack.c.l.b16 %v721
    %v910 = vunpack.c.h.b16 %v721
    %v911 = vunpack.c.l.b16 %v722
    %v912 = vunpack.c.l.b16 %v723
    %v913 = vunpack.c.h.b16 %v723
    %v914 = vunpack.c.l.b16 %v724
    %v915 = vunpack.c.h.b16 %v724
    %v916 = vunpack.c.l.b16 %v725
    %v917 = vunpack.c.h.b16 %v725
    %v918 = vunpack.c.l.b16 %v726
    %v919 = vpack.c.b16 %v814, %v807
    %v920 = vpack.c.b16 %v815, %v808
    %v921 = vpack.c.b16 %v816, %v809
    %v922 = vpack.c.b16 %v817, %v810
    %v923 = vpack.c.b16 %v818, %v811
    %v924 = vpack.c.b16 %v819, %v812
    %v925 = vpack.c.b16 %v820, %v813
    %v926 = vpack.c.b16 %v828, %v821
    %v927 = vpack.c.b16 %v829, %v822
    %v928 = vpack.c.b16 %v830, %v823
    %v929 = vpack.c.b16 %v831, %v824
    %v930 = vpack.c.b16 %v832, %v825
    %v931 = vpack.c.b16 %v833, %v826
    %v932 = vpack.c.b16 %v834, %v827
    %v933 = vpack.c.b16 %v842, %v835
    %v934 = vpack.c.b16 %v843, %v836
    %v935 = vpack.c.b16 %v844, %v837
    %v936 = vpack.c.b16 %v845, %v838
    %v937 = vpack.c.b16 %v846, %v839
    %v938 = vpack.c.b16 %v847, %v840
    %v939 = vpack.c.b16 %v848, %v841
    %v940 = vpack.c.b16 %v856, %v849
    %v941 = vpack.c.b16 %v857, %v850
    %v942 = vpack.c.b16 %v858, %v851
    %v943 = vpack.c.b16 %v859, %v852
    %v944 = vpack.c.b16 %v860, %v853
    %v945 = vpack.c.b16 %v861, %v854
    %v946 = vpack.c.b16 %v862, %v855
    %v947 = vpack.c.b16 %v870, %v863
    %v948 = vpack.c.b16 %v871, %v864
    %v949 = vpack.c.b16 %v872, %v865
    %v950 = vpack.c.b16 %v873, %v866
    %v951 = vpack.c.b16 %v874, %v867
    %v952 = vpack.c.b16 %v875, %v868
    %v953 = vpack.c.b16 %v876, %v869
    %v954 = vpack.c.b16 %v884, %v877
    %v955 = vpack.c.b16 %v885, %v878
    %v956 = vpack.c.b16 %v886, %v879
    %v957 = vpack.c.b16 %v887, %v880
    %v958 = vpack.c.b16 %v888, %v881
    %v959 = vpack.c.b16 %v889, %v882
    %v960 = vpack.c.b16 %v890, %v883
    %v961 = vpack.c.b16 %v898, %v891
    %v962 = vpack.c.b16 %v899, %v892
    %v963 = vpack.c.b16 %v900, %v893
    %v964 = vpack.c.b16 %v901, %v894
    %v965 = vpack.c.b16 %v902, %v895
    %v966 = vpack.c.b16 %v903, %v896
    %v967 = vpack.c.b16 %v904, %v897
    %v968 = vpack.c.b16 %v912, %v905
    %v969 = vpack.c.b16 %v913, %v906
    %v970 = vpack.c.b16 %v914, %v907
    %v971 = vpack.c.b16 %v915, %v908
    %v972 = vpack.c.b16 %v916, %v909
    %v973 = vpack.c.b16 %v917, %v910
    %v974 = vpack.c.b16 %v918, %v911
    %1031 = vmatpush.bf16.msra.mxu0 %v968
    %1032 = vmatpush.bf16.msra.mxu0 %v961
    %1033 = vmatpush.bf16.msra.mxu0 %v954
    %1034 = vmatpush.bf16.msra.mxu0 %v947
    %1035 = vmatpush.bf16.msra.mxu0 %v940
    %1036 = vmatpush.bf16.msra.mxu0 %v933
    %1037 = vmatpush.bf16.msra.mxu0 %v926
    %1038 = vmatpush.bf16.msra.mxu0 %v919
    %1039 = vmatmul.bf16.gmra.mxu0 %v662
    %v1040 = vpop.f32.mrf.mxu0
    %v1041 = vadd.f32 %v729, %v1040
    %v1042 = vpop.f32.mrf.mxu0
    %1043 = vdwg.mxu0
    %1044 = vmatpush.bf16.msra.mxu0 %v969
    %1045 = vmatpush.bf16.msra.mxu0 %v962
    %1046 = vmatpush.bf16.msra.mxu0 %v955
    %1047 = vmatpush.bf16.msra.mxu0 %v948
    %1048 = vmatpush.bf16.msra.mxu0 %v941
    %1049 = vmatpush.bf16.msra.mxu0 %v934
    %1050 = vmatpush.bf16.msra.mxu0 %v927
    %1051 = vmatpush.bf16.msra.mxu0 %v920
    %1052 = vmatmul.bf16.gmra.mxu0 %v662
    %v1053 = vpop.f32.mrf.mxu0
    %v1054 = vadd.f32 %v730, %v1053
    %v1055 = vpop.f32.mrf.mxu0
    %1056 = vdwg.mxu0
    %1057 = vmatpush.bf16.msra.mxu0 %v970
    %1058 = vmatpush.bf16.msra.mxu0 %v963
    %1059 = vmatpush.bf16.msra.mxu0 %v956
    %1060 = vmatpush.bf16.msra.mxu0 %v949
    %1061 = vmatpush.bf16.msra.mxu0 %v942
    %1062 = vmatpush.bf16.msra.mxu0 %v935
    %1063 = vmatpush.bf16.msra.mxu0 %v928
    %1064 = vmatpush.bf16.msra.mxu0 %v921
    %1065 = vmatmul.bf16.gmra.mxu0 %v662
    %v1066 = vpop.f32.mrf.mxu0
    %v1067 = vadd.f32 %v731, %v1066
    %v1068 = vpop.f32.mrf.mxu0
    %1069 = vdwg.mxu0
    %1070 = vmatpush.bf16.msra.mxu0 %v971
    %1071 = vmatpush.bf16.msra.mxu0 %v964
    %1072 = vmatpush.bf16.msra.mxu0 %v957
    %1073 = vmatpush.bf16.msra.mxu0 %v950
    %1074 = vmatpush.bf16.msra.mxu0 %v943
    %1075 = vmatpush.bf16.msra.mxu0 %v936
    %1076 = vmatpush.bf16.msra.mxu0 %v929
    %1077 = vmatpush.bf16.msra.mxu0 %v922
    %1078 = vmatmul.bf16.gmra.mxu0 %v662
    %v1079 = vpop.f32.mrf.mxu0
    %v1080 = vadd.f32 %v732, %v1079
    %v1081 = vpop.f32.mrf.mxu0
    %1082 = vdwg.mxu0
    %1083 = vmatpush.bf16.msra.mxu0 %v972
    %1084 = vmatpush.bf16.msra.mxu0 %v965
    %1085 = vmatpush.bf16.msra.mxu0 %v958
    %1086 = vmatpush.bf16.msra.mxu0 %v951
    %1087 = vmatpush.bf16.msra.mxu0 %v944
    %1088 = vmatpush.bf16.msra.mxu0 %v937
    %1089 = vmatpush.bf16.msra.mxu0 %v930
    %1090 = vmatpush.bf16.msra.mxu0 %v923
    %1091 = vmatmul.bf16.gmra.mxu0 %v662
    %v1092 = vpop.f32.mrf.mxu0
    %v1093 = vadd.f32 %v733, %v1092
    %v1094 = vpop.f32.mrf.mxu0
    %1095 = vdwg.mxu0
    %1096 = vmatpush.bf16.msra.mxu0 %v973
    %1097 = vmatpush.bf16.msra.mxu0 %v966
    %1098 = vmatpush.bf16.msra.mxu0 %v959
    %1099 = vmatpush.bf16.msra.mxu0 %v952
    %1100 = vmatpush.bf16.msra.mxu0 %v945
    %1101 = vmatpush.bf16.msra.mxu0 %v938
    %1102 = vmatpush.bf16.msra.mxu0 %v931
    %1103 = vmatpush.bf16.msra.mxu0 %v924
    %1104 = vmatmul.bf16.gmra.mxu0 %v662
    %v1105 = vpop.f32.mrf.mxu0
    %v1106 = vadd.f32 %v734, %v1105
    %v1107 = vpop.f32.mrf.mxu0
    %1108 = vdwg.mxu0
    %1109 = vmatpush.bf16.msra.mxu0 %v974
    %1110 = vmatpush.bf16.msra.mxu0 %v967
    %1111 = vmatpush.bf16.msra.mxu0 %v960
    %1112 = vmatpush.bf16.msra.mxu0 %v953
    %1113 = vmatpush.bf16.msra.mxu0 %v946
    %1114 = vmatpush.bf16.msra.mxu0 %v939
    %1115 = vmatpush.bf16.msra.mxu0 %v932
    %1116 = vmatpush.bf16.msra.mxu0 %v925
    %1117 = vmatmul.bf16.gmra.mxu0 %v662
    %v1118 = vpop.f32.mrf.mxu0
    %v1119 = vadd.f32 %v735, %v1118
    %v1120 = vpop.f32.mrf.mxu0
    %1121 = vdwg.mxu0
    %v1122 = vmax.f32 %v1041, 0.0
    %v1123 = vmax.f32 %v1054, 0.0
    %v1124 = vmax.f32 %v1067, 0.0
    %v1125 = vmax.f32 %v1080, 0.0
    %v1126 = vmax.f32 %v1093, 0.0
    %v1127 = vmax.f32 %v1106, 0.0
    %v1128 = vmax.f32 %v1119, 0.0
    %1129 = vst [vmem:[#allocation2] sm:$0xff] %v1122
    %1130 = vst [vmem:[#allocation2 + $0x8] sm:$0xff] %v1123
    %1131 = vst [vmem:[#allocation2 + $0x10] sm:$0xff] %v1124
    %1132 = vst [vmem:[#allocation2 + $0x18] sm:$0xff] %v1125
    %1133 = vst [vmem:[#allocation2 + $0x20] sm:$0xff] %v1126
    %1134 = vst [vmem:[#allocation2 + $0x28] sm:$0xff] %v1127
    %1135 = vst.msk [vmem:[#allocation2 + $0x30] sm:$0xff] %vm444, %v1128
    // Predicated region
    $region38: #{autoencoder_forward.1} parent=1 // pred_check
      _
    $region39: #{autoencoder_forward.1} parent=1 // pred_check_branch
      %1137 = sbr.rel (0) target = $region41
    $region40: #{autoencoder_forward.1} parent=1 // pred_region
      %1139 = vsyncadd [#allocation3], 0
      %s1141 = sshll.u32 [#allocation2], 4
      %s1142 = int_to_ptr.vmem [resolvable:$true] %s1141
      %s1143 = sshll.u32 %s9, 4
      %s1144 = int_to_ptr.hbm [resolvable:$true] %s1143
      %1146 = dma.vmem_to_hbm [thread:$0]  %s1142, 896, %s1144, [#allocation3]
    $region41: #{autoencoder_forward.1} parent=1 // pred_fallthru
      _
    // Predicated region
    $region42: #{autoencoder_forward.1} parent=1 // pred_check
      _
    $region43: #{autoencoder_forward.1} parent=1 // pred_check_branch
      %1148 = sbr.rel (0) target = $region45
    $region44: #{autoencoder_forward.1} parent=1 // pred_region
      %1150 = dma.done [#allocation3], 896
    $region45: #{autoencoder_forward.1} parent=1 // pred_fallthru
      _
    %1151 = vsyncpa [#allocation3], 1

</llo_original>
